<compile_context>
chip_gen: v7x
topology: tpu7x:2x2x1
jax: 0.10.0
libtpu: 0.0.40
codegen_flags: <defaults>
</compile_context>

<pallas_src>
import jax
import jax.numpy as jnp
from jax.experimental import pallas as pl
from jax.experimental.pallas import tpu as pltpu


def _round_up(x, m):
    return (x + m - 1) // m * m


def _ner_kernel(x_ref, mask_ref, w1_ref, b1_ref, w2_ref, b2_ref, out_ref):
    """One row-tile of the NER scorer.

    x_ref    : (TN, Dp)   span embeddings (bf16, zero-padded features)
    mask_ref : (TN, 1)    span mask (0./1. float32)
    w1_ref   : (Dp, H)    first linear weight (bf16)
    b1_ref   : (1, H)     first linear bias (f32)
    w2_ref   : (H, LP)    second linear weight, column 0 == dummy class (zeros) (bf16)
    b2_ref   : (1, LP)    second linear bias, column 0 == 0 (f32)
    out_ref  : (TN, LP)   lane-dense output slab; wrapper slices [:, :L]
    """
    x = x_ref[...]
    # feed-forward: Linear -> ReLU (Dropout is identity in eval)
    h = jnp.dot(x, w1_ref[...], preferred_element_type=jnp.float32) + b1_ref[...]
    h = jnp.maximum(h, 0.0)
    # second Linear (dummy class folded in as zero column 0)
    s = jnp.dot(h.astype(w2_ref.dtype), w2_ref[...],
                preferred_element_type=jnp.float32) + b2_ref[...]
    # replace_masked_values on real classes; keep dummy column 0 at exactly 0.
    m = mask_ref[...]                                            # (TN, 1)
    col = jax.lax.broadcasted_iota(jnp.int32, s.shape, 1)        # lane index
    keep = (m > 0.0) | (col == 0)
    out_ref[...] = jnp.where(keep, s, -1e20)


def ner_tagger_forward(span_embeddings, span_mask, params, *, tile_n=512):
    """span_embeddings: (B, S, D) float32; span_mask: (B, S) int/float.

    Returns ner_scores of shape (B, S, num_labels) float32.
    """
    w1, b1, w2, b2 = params["w1"], params["b1"], params["w2"], params["b2"]
    B, S, D = span_embeddings.shape
    H = w1.shape[1]
    Lm1 = w2.shape[1]
    L = Lm1 + 1

    Dp = _round_up(D, 128)       # MXU-aligned contraction dim
    LP = _round_up(L, 128)       # lane-dense class dim (dummy col 0 included)

    N = B * S
    tile_n = max(8, min(tile_n, _round_up(N, 128)))
    assert tile_n % 8 == 0, "row tile must be a multiple of 8 (f32 sublanes)"
    N_pad = _round_up(N, tile_n)

    # Activations: bf16 for the MXU, rows/features zero-padded.
    x = span_embeddings.reshape(N, D).astype(jnp.float32)
    x = jnp.pad(x, ((0, N_pad - N), (0, Dp - D))).astype(jnp.bfloat16)
    m = jnp.pad(span_mask.reshape(N, 1).astype(jnp.float32),
                ((0, N_pad - N), (0, 0)))

    # Weights: bf16, zero-padded; dummy class column 0 folded in as zeros.
    w1p = jnp.pad(w1.astype(jnp.float32), ((0, Dp - D), (0, 0))).astype(jnp.bfloat16)
    b1_2d = b1.reshape(1, H).astype(jnp.float32)
    w2p = jnp.zeros((H, LP), jnp.float32).at[:, 1:L].set(w2).astype(jnp.bfloat16)
    b2p = jnp.zeros((1, LP), jnp.float32).at[:, 1:L].set(b2)

    grid = (N_pad // tile_n,)

    out = pl.pallas_call(
        _ner_kernel,
        out_shape=jax.ShapeDtypeStruct((N_pad, LP), jnp.float32),
        grid_spec=pltpu.PrefetchScalarGridSpec(
            num_scalar_prefetch=0,
            grid=grid,
            in_specs=[
                pl.BlockSpec((tile_n, Dp), lambda i: (i, 0)),
                pl.BlockSpec((tile_n, 1), lambda i: (i, 0)),
                # constant block index -> weights DMA'd once, stay resident
                pl.BlockSpec((Dp, H), lambda i: (0, 0)),
                pl.BlockSpec((1, H), lambda i: (0, 0)),
                pl.BlockSpec((H, LP), lambda i: (0, 0)),
                pl.BlockSpec((1, LP), lambda i: (0, 0)),
            ],
            out_specs=pl.BlockSpec((tile_n, LP), lambda i: (i, 0)),
        ),
        compiler_params=pltpu.CompilerParams(
            dimension_semantics=("parallel",),
        ),
    )(x, m, w1p, b1_2d, w2p, b2p)

    return out[:N, :L].reshape(B, S, L)


def init_params(key, input_dim, num_labels, hidden=256):
    """Deterministic synthetic parameters (shapes match the torch module)."""
    k1, k2, k3, k4 = jax.random.split(key, 4)
    w1 = jax.random.normal(k1, (input_dim, hidden), jnp.float32) * 0.05
    b1 = jax.random.normal(k2, (hidden,), jnp.float32) * 0.01
    w2 = jax.random.normal(k3, (hidden, num_labels - 1), jnp.float32) * 0.05
    b2 = jax.random.normal(k4, (num_labels - 1,), jnp.float32) * 0.01
    return {"w1": w1, "b1": b1, "w2": w2, "b2": b2}


def _reference_forward(span_embeddings, span_mask, params):
    """Pure-JAX f32 reference of the same forward for a sanity check."""
    h = jnp.maximum(span_embeddings @ params["w1"] + params["b1"], 0.0)
    s = h @ params["w2"] + params["b2"]
    m = span_mask[..., None].astype(jnp.float32)
    s = s * m + (1.0 - m) * (-1e20)
    dummy = jnp.zeros(s.shape[:-1] + (1,), s.dtype)
    return jnp.concatenate([dummy, s], axis=-1)


if __name__ == "__main__":
    # small shapes consistent with the module's forward
    B, S, D = 2, 8, 32          # batch, num_spans (time-distributed axis), input_dim
    NUM_LABELS = 9              # num_labels (scorer emits NUM_LABELS - 1, dummy prepended)

    key = jax.random.PRNGKey(0)
    k_emb, k_mask, k_par = jax.random.split(key, 3)

    span_embeddings = jax.random.normal(k_emb, (B, S, D), jnp.float32)
    span_mask = (jax.random.uniform(k_mask, (B, S)) > 0.25).astype(jnp.int32)
    spans = jnp.zeros((B, S, 2), jnp.int32)  # unused in the kernelized path

    params = init_params(k_par, D, NUM_LABELS)

    ner_scores = ner_tagger_forward(span_embeddings, span_mask, params)
    ner_scores = jax.block_until_ready(ner_scores)

    ref = _reference_forward(span_embeddings, span_mask, params)
    assert ner_scores.shape == (B, S, NUM_LABELS)
    # bf16 matmul inputs with f32 accumulation -> loosened tolerance
    assert jnp.allclose(ner_scores, ref, rtol=2e-2, atol=2e-2)
    # dummy class column must be exactly zero (masked and unmasked rows)
    assert jnp.all(ner_scores[..., 0] == 0.0)
    # masked rows carry the -1e20 sentinel on all real classes
    masked = span_mask == 0
    assert jnp.all(jnp.where(masked[..., None], ner_scores[..., 1:] == -1e20, True))

    print("KERNEL_OK")
</pallas_src>

<mosaic_0001>
module attributes {stable_mosaic.version = 11 : i64} {
  func.func @_ner_kernel(%arg0: i32, %arg1: memref<128x128xbf16, #tpu.memory_space<vmem>>, %arg2: memref<128x1xf32, #tpu.memory_space<vmem>>, %arg3: memref<128x256xbf16, #tpu.memory_space<vmem>>, %arg4: memref<1x256xf32, #tpu.memory_space<vmem>>, %arg5: memref<256x128xbf16, #tpu.memory_space<vmem>>, %arg6: memref<1x128xf32, #tpu.memory_space<vmem>>, %arg7: memref<128x128xf32, #tpu.memory_space<vmem>>) attributes {dimension_semantics = [#tpu.dimension_semantics<parallel>], iteration_bounds = array<i64: 1>, scalar_prefetch = 0 : i64, scratch_operands = 0 : i64, tpu.core_type = #tpu.core_type<tc>, window_params = [{transform_indices = @transform_0, window_bounds = array<i64: 128, 128>}, {transform_indices = @transform_1, window_bounds = array<i64: 128, 1>}, {pipeline_mode = #tpu.pipeline_mode<synchronous>, transform_indices = @transform_2, window_bounds = array<i64: 128, 256>}, {pipeline_mode = #tpu.pipeline_mode<synchronous>, transform_indices = @transform_3, window_bounds = array<i64: 1, 256>}, {pipeline_mode = #tpu.pipeline_mode<synchronous>, transform_indices = @transform_4, window_bounds = array<i64: 256, 128>}, {pipeline_mode = #tpu.pipeline_mode<synchronous>, transform_indices = @transform_5, window_bounds = array<i64: 1, 128>}, {transform_indices = @transform_6, window_bounds = array<i64: 128, 128>}]} {
    %c0 = arith.constant 0 : index
    %c0_0 = arith.constant 0 : index
    %0 = vector.load %arg1[%c0, %c0_0] : memref<128x128xbf16, #tpu.memory_space<vmem>>, vector<128x128xbf16>
    %c0_1 = arith.constant 0 : index
    %c0_2 = arith.constant 0 : index
    %1 = vector.load %arg3[%c0_1, %c0_2] : memref<128x256xbf16, #tpu.memory_space<vmem>>, vector<128x256xbf16>
    %cst = arith.constant dense<0.000000e+00> : vector<128x256xf32>
    %2 = tpu.matmul %0, %1, %cst {dimension_numbers = #tpu.dot_dimension_numbers<[1], [0], [0], [1], [0, 0, 1, 1], [], []>} : vector<128x128xbf16>, vector<128x256xbf16>, vector<128x256xf32> -> vector<128x256xf32>
    %c0_3 = arith.constant 0 : index
    %c0_4 = arith.constant 0 : index
    %3 = vector.load %arg4[%c0_3, %c0_4] : memref<1x256xf32, #tpu.memory_space<vmem>>, vector<1x256xf32>
    %4 = vector.broadcast %3 : vector<1x256xf32> to vector<128x256xf32>
    %5 = arith.addf %2, %4 : vector<128x256xf32>
    %cst_5 = arith.constant 0.000000e+00 : f32
    %6 = vector.broadcast %cst_5 : f32 to vector<128x256xf32>
    %7 = arith.maximumf %5, %6 : vector<128x256xf32>
    %8 = arith.truncf %7 : vector<128x256xf32> to vector<128x256xbf16>
    %c0_6 = arith.constant 0 : index
    %c0_7 = arith.constant 0 : index
    %9 = vector.load %arg5[%c0_6, %c0_7] : memref<256x128xbf16, #tpu.memory_space<vmem>>, vector<256x128xbf16>
    %cst_8 = arith.constant dense<0.000000e+00> : vector<128x128xf32>
    %10 = tpu.matmul %8, %9, %cst_8 {dimension_numbers = #tpu.dot_dimension_numbers<[1], [0], [0], [1], [0, 0, 1, 1], [], []>} : vector<128x256xbf16>, vector<256x128xbf16>, vector<128x128xf32> -> vector<128x128xf32>
    %c0_9 = arith.constant 0 : index
    %c0_10 = arith.constant 0 : index
    %11 = vector.load %arg6[%c0_9, %c0_10] : memref<1x128xf32, #tpu.memory_space<vmem>>, vector<1x128xf32>
    %12 = vector.broadcast %11 : vector<1x128xf32> to vector<128x128xf32>
    %13 = arith.addf %10, %12 : vector<128x128xf32>
    %c0_11 = arith.constant 0 : index
    %c0_12 = arith.constant 0 : index
    %14 = vector.load %arg2[%c0_11, %c0_12] : memref<128x1xf32, #tpu.memory_space<vmem>>, vector<128x1xf32>
    %15 = tpu.iota {dimensions = array<i32: 1>} : vector<128x128xi32>
    %cst_13 = arith.constant 0.000000e+00 : f32
    %16 = vector.broadcast %cst_13 : f32 to vector<128x1xf32>
    %17 = arith.cmpf ogt, %14, %16 : vector<128x1xf32>
    %c0_i32 = arith.constant 0 : i32
    %18 = vector.broadcast %c0_i32 : i32 to vector<128x128xi32>
    %19 = arith.cmpi eq, %15, %18 : vector<128x128xi32>
    %20 = vector.broadcast %17 : vector<128x1xi1> to vector<128x128xi1>
    %21 = arith.ori %20, %19 : vector<128x128xi1>
    %cst_14 = arith.constant -1.000000e+20 : f32
    %22 = vector.broadcast %cst_14 : f32 to vector<128x128xf32>
    %23 = arith.select %21, %13, %22 : vector<128x128xi1>, vector<128x128xf32>
    %c0_15 = arith.constant 0 : index
    %c0_16 = arith.constant 0 : index
    %24 = vector.load %arg7[%c0_15, %c0_16] : memref<128x128xf32, #tpu.memory_space<vmem>>, vector<128x128xf32>
    tpu.vector_store %arg7[%c0_15, %c0_16], %23 {strides = array<i32>} : memref<128x128xf32, #tpu.memory_space<vmem>>, vector<128x128xf32>,
    return
  }
  func.func @transform_0(%arg0: i32) -> (i32, i32) {
    %c0_i32 = arith.constant 0 : i32
    %c0_i32_0 = arith.constant 0 : i32
    return %arg0, %c0_i32 : i32, i32
  }
  func.func @transform_1(%arg0: i32) -> (i32, i32) {
    %c0_i32 = arith.constant 0 : i32
    %c0_i32_0 = arith.constant 0 : i32
    return %arg0, %c0_i32 : i32, i32
  }
  func.func @transform_2(%arg0: i32) -> (i32, i32) {
    %c0_i32 = arith.constant 0 : i32
    %c0_i32_0 = arith.constant 0 : i32
    %c0_i32_1 = arith.constant 0 : i32
    return %c0_i32, %c0_i32_0 : i32, i32
  }
  func.func @transform_3(%arg0: i32) -> (i32, i32) {
    %c0_i32 = arith.constant 0 : i32
    %c0_i32_0 = arith.constant 0 : i32
    %c0_i32_1 = arith.constant 0 : i32
    return %c0_i32, %c0_i32_0 : i32, i32
  }
  func.func @transform_4(%arg0: i32) -> (i32, i32) {
    %c0_i32 = arith.constant 0 : i32
    %c0_i32_0 = arith.constant 0 : i32
    %c0_i32_1 = arith.constant 0 : i32
    return %c0_i32, %c0_i32_0 : i32, i32
  }
  func.func @transform_5(%arg0: i32) -> (i32, i32) {
    %c0_i32 = arith.constant 0 : i32
    %c0_i32_0 = arith.constant 0 : i32
    %c0_i32_1 = arith.constant 0 : i32
    return %c0_i32, %c0_i32_0 : i32, i32
  }
  func.func @transform_6(%arg0: i32) -> (i32, i32) {
    %c0_i32 = arith.constant 0 : i32
    %c0_i32_0 = arith.constant 0 : i32
    return %arg0, %c0_i32 : i32, i32
  }
}

</mosaic_0001>

<llo_original>
// kernel: tpu_custom_call.1
$region0: #{tpu_custom_call.1}
  #allocation0 [shape = 'u32[]', space=smem, size = 0x4, offset = 0x4, fixed_abs, tag = 'smem constant byte address 0x4 - core index']
  #allocation1 [shape = 'u32[144,128]{1,0:T(1,128)}', space=vmem, size = 0x12000, scoped, tag = 'internal scratch']
  %s0 = inlined_call_operand.hbm [shape: bf16[128,128], index: 0, kind: input, shape index: {}]
  %s1 = inlined_call_operand.vmem [shape: f32[128,1], index: 1, kind: input, shape index: {}]
  %s2 = inlined_call_operand.vmem [shape: bf16[128,256], index: 2, kind: input, shape index: {}]
  %s3 = inlined_call_operand.vmem [shape: f32[1,256], index: 3, kind: input, shape index: {}]
  %s4 = inlined_call_operand.hbm [shape: bf16[256,128], index: 4, kind: input, shape index: {}]
  %s5 = inlined_call_operand.vmem [shape: f32[1,128], index: 5, kind: input, shape index: {}]
  %s6 = inlined_call_operand.hbm [shape: f32[128,128], index: 6, kind: output, shape index: {}]
  %s7 = sld [smem:[#allocation0]]
  $region42: #{tpu_custom_call.1} parent=0
    _
  %s9 = ssub.s32 1, %s7
  %s10 = scalar_select 0, %s9, %s7
  $region1: #{tpu_custom_call.1} parent=0
    #allocation2 [shape = 'u8[32768]{0}', space=vmem, size = 0x8000, scoped, tag = 'input window, operand 0, single buffered']
    #allocation3 [shape = 's32[1]{0}', space=sflag, size = 0x4, scoped, tag = 'scoped memory for tpu_custom_call.1']
    #allocation4 [shape = 's32[1]{0}', space=sflag, size = 0x4, scoped, tag = 'scoped memory for tpu_custom_call.1']
    #allocation5 [shape = 'u8[65536]{0}', space=vmem, size = 0x10000, scoped, tag = 'input window, operand 4, single buffered']
    #allocation6 [shape = 's32[1]{0}', space=sflag, size = 0x4, scoped, tag = 'scoped memory for tpu_custom_call.1']
    #allocation7 [shape = 'u8[65536]{0}', space=vmem, size = 0x10000, scoped, tag = 'output window, operand 0, single buffered']
    %11 = vsyncpa [#allocation3], 0
    %12 = vsyncpa [#allocation6], 0
    %13 = vsyncpa [#allocation4], 0
    // Predicated region
    $region2: #{tpu_custom_call.1} parent=1 // pred_check
      _
    $region3: #{tpu_custom_call.1} parent=1 // pred_check_branch
      %15 = sbr.rel (0) target = $region5
    $region4: #{tpu_custom_call.1} parent=1 // pred_region
      %s17 = ssub.s32 1024, 1024
      %18 = vsyncadd [#allocation3], %s17
      %s19 = sshll.u32 [#allocation2], 4
      %s20 = int_to_ptr.vmem [resolvable:$true] %s19
      %25 = dma.hbm_to_vmem [thread:$0]  %s0, 1024, %s20, [#allocation3], 64, 64, 4
    $region5: #{tpu_custom_call.1} parent=1 // pred_fallthru
      _
    // Predicated region
    $region6: #{tpu_custom_call.1} parent=1 // pred_check
      _
    $region7: #{tpu_custom_call.1} parent=1 // pred_check_branch
      %27 = sbr.rel (0) target = $region9
    $region8: #{tpu_custom_call.1} parent=1 // pred_region
      _
    $region9: #{tpu_custom_call.1} parent=1 // pred_fallthru
      _
    // Predicated region
    $region10: #{tpu_custom_call.1} parent=1 // pred_check
      _
    $region11: #{tpu_custom_call.1} parent=1 // pred_check_branch
      %29 = sbr.rel (0) target = $region13
    $region12: #{tpu_custom_call.1} parent=1 // pred_region
      _
    $region13: #{tpu_custom_call.1} parent=1 // pred_fallthru
      _
    // Predicated region
    $region14: #{tpu_custom_call.1} parent=1 // pred_check
      _
    $region15: #{tpu_custom_call.1} parent=1 // pred_check_branch
      %31 = sbr.rel (0) target = $region17
    $region16: #{tpu_custom_call.1} parent=1 // pred_region
      _
    $region17: #{tpu_custom_call.1} parent=1 // pred_fallthru
      _
    // Predicated region
    $region18: #{tpu_custom_call.1} parent=1 // pred_check
      _
    $region19: #{tpu_custom_call.1} parent=1 // pred_check_branch
      %33 = sbr.rel (0) target = $region21
    $region20: #{tpu_custom_call.1} parent=1 // pred_region
      %s35 = ssub.s32 2048, 2048
      %36 = vsyncadd [#allocation6], %s35
      %s37 = sshll.u32 [#allocation5], 4
      %s38 = int_to_ptr.vmem [resolvable:$true] %s37
      %43 = dma.hbm_to_vmem [thread:$0]  %s4, 2048, %s38, [#allocation6], 64, 64, 4
    $region21: #{tpu_custom_call.1} parent=1 // pred_fallthru
      _
    // Predicated region
    $region22: #{tpu_custom_call.1} parent=1 // pred_check
      _
    $region23: #{tpu_custom_call.1} parent=1 // pred_check_branch
      %45 = sbr.rel (0) target = $region25
    $region24: #{tpu_custom_call.1} parent=1 // pred_region
      _
    $region25: #{tpu_custom_call.1} parent=1 // pred_fallthru
      _
    // Predicated region
    $region26: #{tpu_custom_call.1} parent=1 // pred_check
      _
    $region27: #{tpu_custom_call.1} parent=1 // pred_check_branch
      %47 = sbr.rel (0) target = $region29
    $region28: #{tpu_custom_call.1} parent=1 // pred_region
      %48 = dma.done [#allocation3], 1024
    $region29: #{tpu_custom_call.1} parent=1 // pred_fallthru
      _
    // Predicated region
    $region30: #{tpu_custom_call.1} parent=1 // pred_check
      _
    $region31: #{tpu_custom_call.1} parent=1 // pred_check_branch
      %50 = sbr.rel (0) target = $region33
    $region32: #{tpu_custom_call.1} parent=1 // pred_region
      %51 = dma.done [#allocation6], 2048
    $region33: #{tpu_custom_call.1} parent=1 // pred_fallthru
      _
    %v53 = vld [vmem:[#allocation2] sm:$0xf]
    %v54 = vld [vmem:[#allocation2 + $0x4] sm:$0xf]
    %v55 = vld [vmem:[#allocation2 + $0x8] sm:$0xf]
    %v56 = vld [vmem:[#allocation2 + $0xc] sm:$0xf]
    %v57 = vld [vmem:[#allocation2 + $0x10] sm:$0xf]
    %v58 = vld [vmem:[#allocation2 + $0x14] sm:$0xf]
    %v59 = vld [vmem:[#allocation2 + $0x18] sm:$0xf]
    %v60 = vld [vmem:[#allocation2 + $0x1c] sm:$0xf]
    %v61 = vld [vmem:[#allocation2 + $0x20] sm:$0xf]
    %v62 = vld [vmem:[#allocation2 + $0x24] sm:$0xf]
    %v63 = vld [vmem:[#allocation2 + $0x28] sm:$0xf]
    %v64 = vld [vmem:[#allocation2 + $0x2c] sm:$0xf]
    %v65 = vld [vmem:[#allocation2 + $0x30] sm:$0xf]
    %v66 = vld [vmem:[#allocation2 + $0x34] sm:$0xf]
    %v67 = vld [vmem:[#allocation2 + $0x38] sm:$0xf]
    %v68 = vld [vmem:[#allocation2 + $0x3c] sm:$0xf]
    %v69 = vld [vmem:[%s2] sm:$0xff]
    %v70 = vld [vmem:[%s2 + $0x8] sm:$0xff]
    %v71 = vld [vmem:[%s2 + $0x10] sm:$0xff]
    %v72 = vld [vmem:[%s2 + $0x18] sm:$0xff]
    %v73 = vld [vmem:[%s2 + $0x20] sm:$0xff]
    %v74 = vld [vmem:[%s2 + $0x28] sm:$0xff]
    %v75 = vld [vmem:[%s2 + $0x30] sm:$0xff]
    %v76 = vld [vmem:[%s2 + $0x38] sm:$0xff]
    %v77 = vld [vmem:[%s2 + $0x40] sm:$0xff]
    %v78 = vld [vmem:[%s2 + $0x48] sm:$0xff]
    %v79 = vld [vmem:[%s2 + $0x50] sm:$0xff]
    %v80 = vld [vmem:[%s2 + $0x58] sm:$0xff]
    %v81 = vld [vmem:[%s2 + $0x60] sm:$0xff]
    %v82 = vld [vmem:[%s2 + $0x68] sm:$0xff]
    %v83 = vld [vmem:[%s2 + $0x70] sm:$0xff]
    %v84 = vld [vmem:[%s2 + $0x78] sm:$0xff]
    %v85 = vld [vmem:[%s3] sm:$0x3]
    %v87 = vlaneseq
    %v88 = vshrl.u32 %v87, 7
    %v89 = vsub.s32 0, %v88
    %v90 = vrot.slane %v85, %v89
    %v91 = vlaneseq
    %v92 = vshrl.u32 %v91, 7
    %v93 = vsub.s32 1, %v92
    %v94 = vrot.slane %v85, %v93
    %v113 = vunpack.c.l.b16 %v53
    %v114 = vunpack.c.l.b16 %v54
    %v115 = vunpack.c.l.b16 %v55
    %v116 = vunpack.c.l.b16 %v56
    %v117 = vunpack.c.l.b16 %v57
    %v118 = vunpack.c.l.b16 %v58
    %v119 = vunpack.c.l.b16 %v59
    %v120 = vunpack.c.l.b16 %v60
    %v121 = vunpack.c.l.b16 %v61
    %v122 = vunpack.c.l.b16 %v62
    %v123 = vunpack.c.l.b16 %v63
    %v124 = vunpack.c.l.b16 %v64
    %v125 = vunpack.c.l.b16 %v65
    %v126 = vunpack.c.l.b16 %v66
    %v127 = vunpack.c.l.b16 %v67
    %v128 = vunpack.c.l.b16 %v68
    %v129 = vpack.c.b16 %v114, %v113
    %v130 = vpack.c.b16 %v116, %v115
    %v131 = vpack.c.b16 %v118, %v117
    %v132 = vpack.c.b16 %v120, %v119
    %v133 = vpack.c.b16 %v122, %v121
    %v134 = vpack.c.b16 %v124, %v123
    %v135 = vpack.c.b16 %v126, %v125
    %v136 = vpack.c.b16 %v128, %v127
    %v161 = vunpack.c.l.b16 %v69
    %v162 = vunpack.c.h.b16 %v69
    %v163 = vunpack.c.l.b16 %v70
    %v164 = vunpack.c.h.b16 %v70
    %v165 = vunpack.c.l.b16 %v71
    %v166 = vunpack.c.h.b16 %v71
    %v167 = vunpack.c.l.b16 %v72
    %v168 = vunpack.c.h.b16 %v72
    %v169 = vunpack.c.l.b16 %v73
    %v170 = vunpack.c.h.b16 %v73
    %v171 = vunpack.c.l.b16 %v74
    %v172 = vunpack.c.h.b16 %v74
    %v173 = vunpack.c.l.b16 %v75
    %v174 = vunpack.c.h.b16 %v75
    %v175 = vunpack.c.l.b16 %v76
    %v176 = vunpack.c.h.b16 %v76
    %v177 = vunpack.c.l.b16 %v77
    %v178 = vunpack.c.h.b16 %v77
    %v179 = vunpack.c.l.b16 %v78
    %v180 = vunpack.c.h.b16 %v78
    %v181 = vunpack.c.l.b16 %v79
    %v182 = vunpack.c.h.b16 %v79
    %v183 = vunpack.c.l.b16 %v80
    %v184 = vunpack.c.h.b16 %v80
    %v185 = vunpack.c.l.b16 %v81
    %v186 = vunpack.c.h.b16 %v81
    %v187 = vunpack.c.l.b16 %v82
    %v188 = vunpack.c.h.b16 %v82
    %v189 = vunpack.c.l.b16 %v83
    %v190 = vunpack.c.h.b16 %v83
    %v191 = vunpack.c.l.b16 %v84
    %v192 = vunpack.c.h.b16 %v84
    %v193 = vpack.c.b16 %v163, %v161
    %v194 = vpack.c.b16 %v164, %v162
    %v195 = vpack.c.b16 %v167, %v165
    %v196 = vpack.c.b16 %v168, %v166
    %v197 = vpack.c.b16 %v171, %v169
    %v198 = vpack.c.b16 %v172, %v170
    %v199 = vpack.c.b16 %v175, %v173
    %v200 = vpack.c.b16 %v176, %v174
    %v201 = vpack.c.b16 %v179, %v177
    %v202 = vpack.c.b16 %v180, %v178
    %v203 = vpack.c.b16 %v183, %v181
    %v204 = vpack.c.b16 %v184, %v182
    %v205 = vpack.c.b16 %v187, %v185
    %v206 = vpack.c.b16 %v188, %v186
    %v207 = vpack.c.b16 %v191, %v189
    %v208 = vpack.c.b16 %v192, %v190
    %225 = vmatprep.subr.bf16.mxu0 %v194
    %226 = vmatpush1.bf16.msra.mxu0 %v193
    %227 = vmatprep.subr.bf16.mxu0 %v196
    %228 = vmatpush1.bf16.msra.mxu0 %v195
    %229 = vmatprep.subr.bf16.mxu0 %v198
    %230 = vmatpush1.bf16.msra.mxu0 %v197
    %231 = vmatprep.subr.bf16.mxu0 %v200
    %232 = vmatpush1.bf16.msra.mxu0 %v199
    %233 = vmatprep.subr.bf16.mxu0 %v202
    %234 = vmatpush1.bf16.msra.mxu0 %v201
    %235 = vmatprep.subr.bf16.mxu0 %v204
    %236 = vmatpush1.bf16.msra.mxu0 %v203
    %237 = vmatprep.subr.bf16.mxu0 %v206
    %238 = vmatpush1.bf16.msra.mxu0 %v205
    %239 = vmatprep.subr.bf16.mxu0 %v208
    %240 = vmatpush1.bf16.msra.mxu0 %v207
    %241 = vmatprep.subr.bf16.mxu0 0
    %242 = vmatpush1.bf16.msra.mxu0 0
    %243 = vmatprep.subr.bf16.mxu0 0
    %244 = vmatpush1.bf16.msra.mxu0 0
    %245 = vmatprep.subr.bf16.mxu0 0
    %246 = vmatpush1.bf16.msra.mxu0 0
    %247 = vmatprep.subr.bf16.mxu0 0
    %248 = vmatpush1.bf16.msra.mxu0 0
    %249 = vmatprep.subr.bf16.mxu0 0
    %250 = vmatpush1.bf16.msra.mxu0 0
    %251 = vmatprep.subr.bf16.mxu0 0
    %252 = vmatpush1.bf16.msra.mxu0 0
    %253 = vmatprep.subr.bf16.mxu0 0
    %254 = vmatpush1.bf16.msra.mxu0 0
    %255 = vmatprep.subr.bf16.mxu0 0
    %256 = vmatpush1.bf16.msra.mxu0 0
    %257 = vmatprep.mubr.bf16.mxu0 0
    %258 = vmatmul.mubr.bf16.gmra.mrb[0].mxu0 %v129
    %v259 = vpop.f32.mrb[0].mxu0
    %v260 = vadd.f32 %v90, %v259
    %v261 = vpop.f32.mrb[0].mxu0
    %v262 = vadd.f32 %v94, %v261
    %v263 = vpop.f32.mrb[0].mxu0
    %v264 = vadd.f32 %v90, %v263
    %v265 = vpop.f32.mrb[0].mxu0
    %v266 = vadd.f32 %v94, %v265
    %267 = vmatprep.mubr.bf16.mxu0 0
    %268 = vmatmul.mubr.bf16.gmra.mrb[0].mxu0 %v130
    %v269 = vpop.f32.mrb[0].mxu0
    %v270 = vadd.f32 %v90, %v269
    %v271 = vpop.f32.mrb[0].mxu0
    %v272 = vadd.f32 %v94, %v271
    %v273 = vpop.f32.mrb[0].mxu0
    %v274 = vadd.f32 %v90, %v273
    %v275 = vpop.f32.mrb[0].mxu0
    %v276 = vadd.f32 %v94, %v275
    %277 = vmatprep.mubr.bf16.mxu0 0
    %278 = vmatmul.mubr.bf16.gmra.mrb[0].mxu0 %v131
    %v279 = vpop.f32.mrb[0].mxu0
    %v280 = vadd.f32 %v90, %v279
    %v281 = vpop.f32.mrb[0].mxu0
    %v282 = vadd.f32 %v94, %v281
    %v283 = vpop.f32.mrb[0].mxu0
    %v284 = vadd.f32 %v90, %v283
    %v285 = vpop.f32.mrb[0].mxu0
    %v286 = vadd.f32 %v94, %v285
    %287 = vmatprep.mubr.bf16.mxu0 0
    %288 = vmatmul.mubr.bf16.gmra.mrb[0].mxu0 %v132
    %v289 = vpop.f32.mrb[0].mxu0
    %v290 = vadd.f32 %v90, %v289
    %v291 = vpop.f32.mrb[0].mxu0
    %v292 = vadd.f32 %v94, %v291
    %v293 = vpop.f32.mrb[0].mxu0
    %v294 = vadd.f32 %v90, %v293
    %v295 = vpop.f32.mrb[0].mxu0
    %v296 = vadd.f32 %v94, %v295
    %297 = vmatprep.mubr.bf16.mxu0 0
    %298 = vmatmul.mubr.bf16.gmra.mrb[0].mxu0 %v133
    %v299 = vpop.f32.mrb[0].mxu0
    %v300 = vadd.f32 %v90, %v299
    %v301 = vpop.f32.mrb[0].mxu0
    %v302 = vadd.f32 %v94, %v301
    %v303 = vpop.f32.mrb[0].mxu0
    %v304 = vadd.f32 %v90, %v303
    %v305 = vpop.f32.mrb[0].mxu0
    %v306 = vadd.f32 %v94, %v305
    %307 = vmatprep.mubr.bf16.mxu0 0
    %308 = vmatmul.mubr.bf16.gmra.mrb[0].mxu0 %v134
    %v309 = vpop.f32.mrb[0].mxu0
    %v310 = vadd.f32 %v90, %v309
    %v311 = vpop.f32.mrb[0].mxu0
    %v312 = vadd.f32 %v94, %v311
    %v313 = vpop.f32.mrb[0].mxu0
    %v314 = vadd.f32 %v90, %v313
    %v315 = vpop.f32.mrb[0].mxu0
    %v316 = vadd.f32 %v94, %v315
    %317 = vmatprep.mubr.bf16.mxu0 0
    %318 = vmatmul.mubr.bf16.gmra.mrb[0].mxu0 %v135
    %v319 = vpop.f32.mrb[0].mxu0
    %v320 = vadd.f32 %v90, %v319
    %v321 = vpop.f32.mrb[0].mxu0
    %v322 = vadd.f32 %v94, %v321
    %v323 = vpop.f32.mrb[0].mxu0
    %v324 = vadd.f32 %v90, %v323
    %v325 = vpop.f32.mrb[0].mxu0
    %v326 = vadd.f32 %v94, %v325
    %327 = vmatprep.mubr.bf16.mxu0 0
    %328 = vmatmul.mubr.bf16.gmra.mrb[0].mxu0 %v136
    %v329 = vpop.f32.mrb[0].mxu0
    %v330 = vadd.f32 %v90, %v329
    %v331 = vpop.f32.mrb[0].mxu0
    %v332 = vadd.f32 %v94, %v331
    %v333 = vpop.f32.mrb[0].mxu0
    %v334 = vadd.f32 %v90, %v333
    %v335 = vpop.f32.mrb[0].mxu0
    %v336 = vadd.f32 %v94, %v335
    %337 = vdwg.mxu0
    %v338 = vmax.f32 %v260, 0.0
    %v339 = vmax.f32 %v262, 0.0
    %v340 = vmax.f32 %v264, 0.0
    %v341 = vmax.f32 %v266, 0.0
    %v342 = vmax.f32 %v270, 0.0
    %v343 = vmax.f32 %v272, 0.0
    %v344 = vmax.f32 %v274, 0.0
    %v345 = vmax.f32 %v276, 0.0
    %v346 = vmax.f32 %v280, 0.0
    %v347 = vmax.f32 %v282, 0.0
    %v348 = vmax.f32 %v284, 0.0
    %v349 = vmax.f32 %v286, 0.0
    %v350 = vmax.f32 %v290, 0.0
    %v351 = vmax.f32 %v292, 0.0
    %v352 = vmax.f32 %v294, 0.0
    %v353 = vmax.f32 %v296, 0.0
    %v354 = vmax.f32 %v300, 0.0
    %v355 = vmax.f32 %v302, 0.0
    %v356 = vmax.f32 %v304, 0.0
    %v357 = vmax.f32 %v306, 0.0
    %v358 = vmax.f32 %v310, 0.0
    %v359 = vmax.f32 %v312, 0.0
    %v360 = vmax.f32 %v314, 0.0
    %v361 = vmax.f32 %v316, 0.0
    %v362 = vmax.f32 %v320, 0.0
    %v363 = vmax.f32 %v322, 0.0
    %v364 = vmax.f32 %v324, 0.0
    %v365 = vmax.f32 %v326, 0.0
    %v366 = vmax.f32 %v330, 0.0
    %v367 = vmax.f32 %v332, 0.0
    %v368 = vmax.f32 %v334, 0.0
    %v369 = vmax.f32 %v336, 0.0
    %v370 = vpack.c.bf16 %v340, %v338
    %v371 = vpack.c.bf16 %v341, %v339
    %v372 = vpack.c.bf16 %v344, %v342
    %v373 = vpack.c.bf16 %v345, %v343
    %v374 = vpack.c.bf16 %v348, %v346
    %v375 = vpack.c.bf16 %v349, %v347
    %v376 = vpack.c.bf16 %v352, %v350
    %v377 = vpack.c.bf16 %v353, %v351
    %v378 = vpack.c.bf16 %v356, %v354
    %v379 = vpack.c.bf16 %v357, %v355
    %v380 = vpack.c.bf16 %v360, %v358
    %v381 = vpack.c.bf16 %v361, %v359
    %v382 = vpack.c.bf16 %v364, %v362
    %v383 = vpack.c.bf16 %v365, %v363
    %v384 = vpack.c.bf16 %v368, %v366
    %v385 = vpack.c.bf16 %v369, %v367
    %v386 = vld [vmem:[#allocation5] sm:$0xf]
    %v387 = vld [vmem:[#allocation5 + $0x4] sm:$0xf]
    %v388 = vld [vmem:[#allocation5 + $0x8] sm:$0xf]
    %v389 = vld [vmem:[#allocation5 + $0xc] sm:$0xf]
    %v390 = vld [vmem:[#allocation5 + $0x10] sm:$0xf]
    %v391 = vld [vmem:[#allocation5 + $0x14] sm:$0xf]
    %v392 = vld [vmem:[#allocation5 + $0x18] sm:$0xf]
    %v393 = vld [vmem:[#allocation5 + $0x1c] sm:$0xf]
    %v394 = vld [vmem:[#allocation5 + $0x20] sm:$0xf]
    %v395 = vld [vmem:[#allocation5 + $0x24] sm:$0xf]
    %v396 = vld [vmem:[#allocation5 + $0x28] sm:$0xf]
    %v397 = vld [vmem:[#allocation5 + $0x2c] sm:$0xf]
    %v398 = vld [vmem:[#allocation5 + $0x30] sm:$0xf]
    %v399 = vld [vmem:[#allocation5 + $0x34] sm:$0xf]
    %v400 = vld [vmem:[#allocation5 + $0x38] sm:$0xf]
    %v401 = vld [vmem:[#allocation5 + $0x3c] sm:$0xf]
    %v402 = vld [vmem:[#allocation5 + $0x40] sm:$0xf]
    %v403 = vld [vmem:[#allocation5 + $0x44] sm:$0xf]
    %v404 = vld [vmem:[#allocation5 + $0x48] sm:$0xf]
    %v405 = vld [vmem:[#allocation5 + $0x4c] sm:$0xf]
    %v406 = vld [vmem:[#allocation5 + $0x50] sm:$0xf]
    %v407 = vld [vmem:[#allocation5 + $0x54] sm:$0xf]
    %v408 = vld [vmem:[#allocation5 + $0x58] sm:$0xf]
    %v409 = vld [vmem:[#allocation5 + $0x5c] sm:$0xf]
    %v410 = vld [vmem:[#allocation5 + $0x60] sm:$0xf]
    %v411 = vld [vmem:[#allocation5 + $0x64] sm:$0xf]
    %v412 = vld [vmem:[#allocation5 + $0x68] sm:$0xf]
    %v413 = vld [vmem:[#allocation5 + $0x6c] sm:$0xf]
    %v414 = vld [vmem:[#allocation5 + $0x70] sm:$0xf]
    %v415 = vld [vmem:[#allocation5 + $0x74] sm:$0xf]
    %v416 = vld [vmem:[#allocation5 + $0x78] sm:$0xf]
    %v417 = vld [vmem:[#allocation5 + $0x7c] sm:$0xf]
    %v418 = vld [vmem:[%s5] sm:$0x1]
    %v420 = vlaneseq
    %v421 = vshrl.u32 %v420, 7
    %v422 = vsub.s32 0, %v421
    %v423 = vrot.slane %v418, %v422
    %v457 = vunpack.c.l.b16 %v386
    %v458 = vunpack.c.l.b16 %v387
    %v459 = vunpack.c.l.b16 %v388
    %v460 = vunpack.c.l.b16 %v389
    %v461 = vunpack.c.l.b16 %v390
    %v462 = vunpack.c.l.b16 %v391
    %v463 = vunpack.c.l.b16 %v392
    %v464 = vunpack.c.l.b16 %v393
    %v465 = vunpack.c.l.b16 %v394
    %v466 = vunpack.c.l.b16 %v395
    %v467 = vunpack.c.l.b16 %v396
    %v468 = vunpack.c.l.b16 %v397
    %v469 = vunpack.c.l.b16 %v398
    %v470 = vunpack.c.l.b16 %v399
    %v471 = vunpack.c.l.b16 %v400
    %v472 = vunpack.c.l.b16 %v401
    %v473 = vunpack.c.l.b16 %v402
    %v474 = vunpack.c.l.b16 %v403
    %v475 = vunpack.c.l.b16 %v404
    %v476 = vunpack.c.l.b16 %v405
    %v477 = vunpack.c.l.b16 %v406
    %v478 = vunpack.c.l.b16 %v407
    %v479 = vunpack.c.l.b16 %v408
    %v480 = vunpack.c.l.b16 %v409
    %v481 = vunpack.c.l.b16 %v410
    %v482 = vunpack.c.l.b16 %v411
    %v483 = vunpack.c.l.b16 %v412
    %v484 = vunpack.c.l.b16 %v413
    %v485 = vunpack.c.l.b16 %v414
    %v486 = vunpack.c.l.b16 %v415
    %v487 = vunpack.c.l.b16 %v416
    %v488 = vunpack.c.l.b16 %v417
    %v489 = vpack.c.b16 %v458, %v457
    %v490 = vpack.c.b16 %v460, %v459
    %v491 = vpack.c.b16 %v462, %v461
    %v492 = vpack.c.b16 %v464, %v463
    %v493 = vpack.c.b16 %v466, %v465
    %v494 = vpack.c.b16 %v468, %v467
    %v495 = vpack.c.b16 %v470, %v469
    %v496 = vpack.c.b16 %v472, %v471
    %v497 = vpack.c.b16 %v474, %v473
    %v498 = vpack.c.b16 %v476, %v475
    %v499 = vpack.c.b16 %v478, %v477
    %v500 = vpack.c.b16 %v480, %v479
    %v501 = vpack.c.b16 %v482, %v481
    %v502 = vpack.c.b16 %v484, %v483
    %v503 = vpack.c.b16 %v486, %v485
    %v504 = vpack.c.b16 %v488, %v487
    %521 = vmatprep.subr.bf16.mxu0 0
    %522 = vmatpush1.bf16.msra.mxu0 %v489
    %523 = vmatprep.subr.bf16.mxu0 0
    %524 = vmatpush1.bf16.msra.mxu0 %v490
    %525 = vmatprep.subr.bf16.mxu0 0
    %526 = vmatpush1.bf16.msra.mxu0 %v491
    %527 = vmatprep.subr.bf16.mxu0 0
    %528 = vmatpush1.bf16.msra.mxu0 %v492
    %529 = vmatprep.subr.bf16.mxu0 0
    %530 = vmatpush1.bf16.msra.mxu0 %v493
    %531 = vmatprep.subr.bf16.mxu0 0
    %532 = vmatpush1.bf16.msra.mxu0 %v494
    %533 = vmatprep.subr.bf16.mxu0 0
    %534 = vmatpush1.bf16.msra.mxu0 %v495
    %535 = vmatprep.subr.bf16.mxu0 0
    %536 = vmatpush1.bf16.msra.mxu0 %v496
    %537 = vmatprep.subr.bf16.mxu0 0
    %538 = vmatpush1.bf16.msra.mxu0 %v497
    %539 = vmatprep.subr.bf16.mxu0 0
    %540 = vmatpush1.bf16.msra.mxu0 %v498
    %541 = vmatprep.subr.bf16.mxu0 0
    %542 = vmatpush1.bf16.msra.mxu0 %v499
    %543 = vmatprep.subr.bf16.mxu0 0
    %544 = vmatpush1.bf16.msra.mxu0 %v500
    %545 = vmatprep.subr.bf16.mxu0 0
    %546 = vmatpush1.bf16.msra.mxu0 %v501
    %547 = vmatprep.subr.bf16.mxu0 0
    %548 = vmatpush1.bf16.msra.mxu0 %v502
    %549 = vmatprep.subr.bf16.mxu0 0
    %550 = vmatpush1.bf16.msra.mxu0 %v503
    %551 = vmatprep.subr.bf16.mxu0 0
    %552 = vmatpush1.bf16.msra.mxu0 %v504
    %553 = vmatprep.mubr.bf16.mxu0 %v371
    %554 = vmatmul.mubr.bf16.gmra.mrb[0].mxu0 %v370
    %v555 = vpop.f32.mrb[0].mxu0
    %v556 = vadd.f32 %v423, %v555
    %v557 = vpop.f32.mrb[0].mxu0
    %v558 = vpop.f32.mrb[0].mxu0
    %v559 = vadd.f32 %v423, %v558
    %v560 = vpop.f32.mrb[0].mxu0
    %561 = vmatprep.mubr.bf16.mxu0 %v373
    %562 = vmatmul.mubr.bf16.gmra.mrb[0].mxu0 %v372
    %v563 = vpop.f32.mrb[0].mxu0
    %v564 = vadd.f32 %v423, %v563
    %v565 = vpop.f32.mrb[0].mxu0
    %v566 = vpop.f32.mrb[0].mxu0
    %v567 = vadd.f32 %v423, %v566
    %v568 = vpop.f32.mrb[0].mxu0
    %569 = vmatprep.mubr.bf16.mxu0 %v375
    %570 = vmatmul.mubr.bf16.gmra.mrb[0].mxu0 %v374
    %v571 = vpop.f32.mrb[0].mxu0
    %v572 = vadd.f32 %v423, %v571
    %v573 = vpop.f32.mrb[0].mxu0
    %v574 = vpop.f32.mrb[0].mxu0
    %v575 = vadd.f32 %v423, %v574
    %v576 = vpop.f32.mrb[0].mxu0
    %577 = vmatprep.mubr.bf16.mxu0 %v377
    %578 = vmatmul.mubr.bf16.gmra.mrb[0].mxu0 %v376
    %v579 = vpop.f32.mrb[0].mxu0
    %v580 = vadd.f32 %v423, %v579
    %v581 = vpop.f32.mrb[0].mxu0
    %v582 = vpop.f32.mrb[0].mxu0
    %v583 = vadd.f32 %v423, %v582
    %v584 = vpop.f32.mrb[0].mxu0
    %585 = vmatprep.mubr.bf16.mxu0 %v379
    %586 = vmatmul.mubr.bf16.gmra.mrb[0].mxu0 %v378
    %v587 = vpop.f32.mrb[0].mxu0
    %v588 = vadd.f32 %v423, %v587
    %v589 = vpop.f32.mrb[0].mxu0
    %v590 = vpop.f32.mrb[0].mxu0
    %v591 = vadd.f32 %v423, %v590
    %v592 = vpop.f32.mrb[0].mxu0
    %593 = vmatprep.mubr.bf16.mxu0 %v381
    %594 = vmatmul.mubr.bf16.gmra.mrb[0].mxu0 %v380
    %v595 = vpop.f32.mrb[0].mxu0
    %v596 = vadd.f32 %v423, %v595
    %v597 = vpop.f32.mrb[0].mxu0
    %v598 = vpop.f32.mrb[0].mxu0
    %v599 = vadd.f32 %v423, %v598
    %v600 = vpop.f32.mrb[0].mxu0
    %601 = vmatprep.mubr.bf16.mxu0 %v383
    %602 = vmatmul.mubr.bf16.gmra.mrb[0].mxu0 %v382
    %v603 = vpop.f32.mrb[0].mxu0
    %v604 = vadd.f32 %v423, %v603
    %v605 = vpop.f32.mrb[0].mxu0
    %v606 = vpop.f32.mrb[0].mxu0
    %v607 = vadd.f32 %v423, %v606
    %v608 = vpop.f32.mrb[0].mxu0
    %609 = vmatprep.mubr.bf16.mxu0 %v385
    %610 = vmatmul.mubr.bf16.gmra.mrb[0].mxu0 %v384
    %v611 = vpop.f32.mrb[0].mxu0
    %v612 = vadd.f32 %v423, %v611
    %v613 = vpop.f32.mrb[0].mxu0
    %v614 = vpop.f32.mrb[0].mxu0
    %v615 = vadd.f32 %v423, %v614
    %v616 = vpop.f32.mrb[0].mxu0
    %617 = vdwg.mxu0
    %v618 = vld [vmem:[%s1] sm:$0xff]
    %v619 = vld [vmem:[%s1 + $0x8] sm:$0xff]
    %v620 = vld [vmem:[%s1 + $0x10] sm:$0xff]
    %v621 = vld [vmem:[%s1 + $0x18] sm:$0xff]
    %v622 = vld [vmem:[%s1 + $0x20] sm:$0xff]
    %v623 = vld [vmem:[%s1 + $0x28] sm:$0xff]
    %v624 = vld [vmem:[%s1 + $0x30] sm:$0xff]
    %v625 = vld [vmem:[%s1 + $0x38] sm:$0xff]
    %v626 = vld [vmem:[%s1 + $0x40] sm:$0xff]
    %v627 = vld [vmem:[%s1 + $0x48] sm:$0xff]
    %v628 = vld [vmem:[%s1 + $0x50] sm:$0xff]
    %v629 = vld [vmem:[%s1 + $0x58] sm:$0xff]
    %v630 = vld [vmem:[%s1 + $0x60] sm:$0xff]
    %v631 = vld [vmem:[%s1 + $0x68] sm:$0xff]
    %v632 = vld [vmem:[%s1 + $0x70] sm:$0xff]
    %v633 = vld [vmem:[%s1 + $0x78] sm:$0xff]
    %v634 = vlaneseq
    %v635 = vand.u32 %v634, 127
    %vm636 = vcmp.gt.f32.partialorder %v618, 0.0
    %vm637 = vcmp.gt.f32.partialorder %v619, 0.0
    %vm638 = vcmp.gt.f32.partialorder %v620, 0.0
    %vm639 = vcmp.gt.f32.partialorder %v621, 0.0
    %vm640 = vcmp.gt.f32.partialorder %v622, 0.0
    %vm641 = vcmp.gt.f32.partialorder %v623, 0.0
    %vm642 = vcmp.gt.f32.partialorder %v624, 0.0
    %vm643 = vcmp.gt.f32.partialorder %v625, 0.0
    %vm644 = vcmp.gt.f32.partialorder %v626, 0.0
    %vm645 = vcmp.gt.f32.partialorder %v627, 0.0
    %vm646 = vcmp.gt.f32.partialorder %v628, 0.0
    %vm647 = vcmp.gt.f32.partialorder %v629, 0.0
    %vm648 = vcmp.gt.f32.partialorder %v630, 0.0
    %vm649 = vcmp.gt.f32.partialorder %v631, 0.0
    %vm650 = vcmp.gt.f32.partialorder %v632, 0.0
    %vm651 = vcmp.gt.f32.partialorder %v633, 0.0
    %vm652 = vcmp.eq.s32.totalorder %v635, 0
    %v653 = vsel %vm636, 1, 0
    %v654 = vsel %vm637, 1, 0
    %v655 = vsel %vm638, 1, 0
    %v656 = vsel %vm639, 1, 0
    %v657 = vsel %vm640, 1, 0
    %v658 = vsel %vm641, 1, 0
    %v659 = vsel %vm642, 1, 0
    %v660 = vsel %vm643, 1, 0
    %v661 = vsel %vm644, 1, 0
    %v662 = vsel %vm645, 1, 0
    %v663 = vsel %vm646, 1, 0
    %v664 = vsel %vm647, 1, 0
    %v665 = vsel %vm648, 1, 0
    %v666 = vsel %vm649, 1, 0
    %v667 = vsel %vm650, 1, 0
    %v668 = vsel %vm651, 1, 0
    %669 = vset.pattern.permute.xlu0 0
    %670 = vperm.xlu0 %669, %v653
    %v671 = vpop.permute.xlu0 %670
    %672 = vset.pattern.permute.xlu0 0
    %673 = vperm.xlu0 %672, %v654
    %v674 = vpop.permute.xlu0 %673
    %675 = vset.pattern.permute.xlu0 0
    %676 = vperm.xlu0 %675, %v655
    %v677 = vpop.permute.xlu0 %676
    %678 = vset.pattern.permute.xlu0 0
    %679 = vperm.xlu0 %678, %v656
    %v680 = vpop.permute.xlu0 %679
    %681 = vset.pattern.permute.xlu0 0
    %682 = vperm.xlu0 %681, %v657
    %v683 = vpop.permute.xlu0 %682
    %684 = vset.pattern.permute.xlu0 0
    %685 = vperm.xlu0 %684, %v658
    %v686 = vpop.permute.xlu0 %685
    %687 = vset.pattern.permute.xlu0 0
    %688 = vperm.xlu0 %687, %v659
    %v689 = vpop.permute.xlu0 %688
    %690 = vset.pattern.permute.xlu0 0
    %691 = vperm.xlu0 %690, %v660
    %v692 = vpop.permute.xlu0 %691
    %693 = vset.pattern.permute.xlu0 0
    %694 = vperm.xlu0 %693, %v661
    %v695 = vpop.permute.xlu0 %694
    %696 = vset.pattern.permute.xlu0 0
    %697 = vperm.xlu0 %696, %v662
    %v698 = vpop.permute.xlu0 %697
    %699 = vset.pattern.permute.xlu0 0
    %700 = vperm.xlu0 %699, %v663
    %v701 = vpop.permute.xlu0 %700
    %702 = vset.pattern.permute.xlu0 0
    %703 = vperm.xlu0 %702, %v664
    %v704 = vpop.permute.xlu0 %703
    %705 = vset.pattern.permute.xlu0 0
    %706 = vperm.xlu0 %705, %v665
    %v707 = vpop.permute.xlu0 %706
    %708 = vset.pattern.permute.xlu0 0
    %709 = vperm.xlu0 %708, %v666
    %v710 = vpop.permute.xlu0 %709
    %711 = vset.pattern.permute.xlu0 0
    %712 = vperm.xlu0 %711, %v667
    %v713 = vpop.permute.xlu0 %712
    %714 = vset.pattern.permute.xlu0 0
    %715 = vperm.xlu0 %714, %v668
    %v716 = vpop.permute.xlu0 %715
    %vm717 = vcmp.eq.s32.totalorder %v671, 1
    %vm718 = vcmp.eq.s32.totalorder %v674, 1
    %vm719 = vcmp.eq.s32.totalorder %v677, 1
    %vm720 = vcmp.eq.s32.totalorder %v680, 1
    %vm721 = vcmp.eq.s32.totalorder %v683, 1
    %vm722 = vcmp.eq.s32.totalorder %v686, 1
    %vm723 = vcmp.eq.s32.totalorder %v689, 1
    %vm724 = vcmp.eq.s32.totalorder %v692, 1
    %vm725 = vcmp.eq.s32.totalorder %v695, 1
    %vm726 = vcmp.eq.s32.totalorder %v698, 1
    %vm727 = vcmp.eq.s32.totalorder %v701, 1
    %vm728 = vcmp.eq.s32.totalorder %v704, 1
    %vm729 = vcmp.eq.s32.totalorder %v707, 1
    %vm730 = vcmp.eq.s32.totalorder %v710, 1
    %vm731 = vcmp.eq.s32.totalorder %v713, 1
    %vm732 = vcmp.eq.s32.totalorder %v716, 1
    %vm733 = vmor %vm717, %vm652
    %vm734 = vmor %vm718, %vm652
    %vm735 = vmor %vm719, %vm652
    %vm736 = vmor %vm720, %vm652
    %vm737 = vmor %vm721, %vm652
    %vm738 = vmor %vm722, %vm652
    %vm739 = vmor %vm723, %vm652
    %vm740 = vmor %vm724, %vm652
    %vm741 = vmor %vm725, %vm652
    %vm742 = vmor %vm726, %vm652
    %vm743 = vmor %vm727, %vm652
    %vm744 = vmor %vm728, %vm652
    %vm745 = vmor %vm729, %vm652
    %vm746 = vmor %vm730, %vm652
    %vm747 = vmor %vm731, %vm652
    %vm748 = vmor %vm732, %vm652
    %v749 = vsel %vm733, %v556, -1e+20
    %v750 = vsel %vm734, %v559, -1e+20
    %v751 = vsel %vm735, %v564, -1e+20
    %v752 = vsel %vm736, %v567, -1e+20
    %v753 = vsel %vm737, %v572, -1e+20
    %v754 = vsel %vm738, %v575, -1e+20
    %v755 = vsel %vm739, %v580, -1e+20
    %v756 = vsel %vm740, %v583, -1e+20
    %v757 = vsel %vm741, %v588, -1e+20
    %v758 = vsel %vm742, %v591, -1e+20
    %v759 = vsel %vm743, %v596, -1e+20
    %v760 = vsel %vm744, %v599, -1e+20
    %v761 = vsel %vm745, %v604, -1e+20
    %v762 = vsel %vm746, %v607, -1e+20
    %v763 = vsel %vm747, %v612, -1e+20
    %v764 = vsel %vm748, %v615, -1e+20
    %765 = vst [vmem:[#allocation7] sm:$0xff] %v749
    %766 = vst [vmem:[#allocation7 + $0x8] sm:$0xff] %v750
    %767 = vst [vmem:[#allocation7 + $0x10] sm:$0xff] %v751
    %768 = vst [vmem:[#allocation7 + $0x18] sm:$0xff] %v752
    %769 = vst [vmem:[#allocation7 + $0x20] sm:$0xff] %v753
    %770 = vst [vmem:[#allocation7 + $0x28] sm:$0xff] %v754
    %771 = vst [vmem:[#allocation7 + $0x30] sm:$0xff] %v755
    %772 = vst [vmem:[#allocation7 + $0x38] sm:$0xff] %v756
    %773 = vst [vmem:[#allocation7 + $0x40] sm:$0xff] %v757
    %774 = vst [vmem:[#allocation7 + $0x48] sm:$0xff] %v758
    %775 = vst [vmem:[#allocation7 + $0x50] sm:$0xff] %v759
    %776 = vst [vmem:[#allocation7 + $0x58] sm:$0xff] %v760
    %777 = vst [vmem:[#allocation7 + $0x60] sm:$0xff] %v761
    %778 = vst [vmem:[#allocation7 + $0x68] sm:$0xff] %v762
    %779 = vst [vmem:[#allocation7 + $0x70] sm:$0xff] %v763
    %780 = vst [vmem:[#allocation7 + $0x78] sm:$0xff] %v764
    // Predicated region
    $region34: #{tpu_custom_call.1} parent=1 // pred_check
      _
    $region35: #{tpu_custom_call.1} parent=1 // pred_check_branch
      %782 = sbr.rel (0) target = $region37
    $region36: #{tpu_custom_call.1} parent=1 // pred_region
      %s784 = ssub.s32 2048, 2048
      %785 = vsyncadd [#allocation4], %s784
      %s786 = sshll.u32 [#allocation7], 4
      %s787 = int_to_ptr.vmem [resolvable:$true] %s786
      %792 = dma.vmem_to_hbm [thread:$0]  %s787, 2048, %s6, [#allocation4], 128, 128, 8
    $region37: #{tpu_custom_call.1} parent=1 // pred_fallthru
      _
    // Predicated region
    $region38: #{tpu_custom_call.1} parent=1 // pred_check
      _
    $region39: #{tpu_custom_call.1} parent=1 // pred_check_branch
      %794 = sbr.rel (0) target = $region41
    $region40: #{tpu_custom_call.1} parent=1 // pred_region
      %795 = dma.done [#allocation4], 2048
    $region41: #{tpu_custom_call.1} parent=1 // pred_fallthru
      _
    %796 = vsyncpa [#allocation3], 1
    %797 = vsyncpa [#allocation6], 1
    %798 = vsyncpa [#allocation4], 1

</llo_original>
